<compile_context>
chip_gen: v6e
topology: v6e:2x2x1
jax: 0.10.0
libtpu: 0.0.40
codegen_flags: <defaults>
</compile_context>

<pallas_src>
import jax
import jax.numpy as jnp
from jax import lax
from jax.experimental import pallas as pl
from jax.experimental.pallas import tpu as pltpu


def _round_up(n, m):
    return ((n + m - 1) // m) * m


def _vmem_ceiling_bytes():
    """~80% of physical VMEM (headroom for compiler scratch / semaphores)."""
    try:
        cap = int(pltpu.get_tpu_info().vmem_capacity_bytes)
    except Exception:
        cap = 64 * 1024 * 1024  # conservative fallback: v7x per-TC VMEM
    return max(16 * 1024 * 1024, int(cap * 0.8))


def _choose_tile_b(B, F, requested, vmem_ceiling):
    """Pick the batch tile: as large as the VMEM budget allows, a multiple of
    128 whenever more than one tile is needed (lane-dense output stores)."""
    b_up8 = _round_up(B, 8)
    bytes_per_row = 4 * (F + 1)              # one x row + one output element
    # Spend at most ~1/4 of the VMEM ceiling on double-buffered streaming tiles.
    budget_rows = max(128, (vmem_ceiling // 4) // (2 * bytes_per_row))
    tile = min(requested, budget_rows, b_up8)
    if tile >= b_up8:
        return b_up8                         # one tile covers the whole batch
    return max(128, (tile // 128) * 128)     # multi-tile: lane-friendly size


def annr_kernel(x_ref, w1_ref, b1_ref, w2_ref, b2_ref, w3_ref, b3_ref, o_ref):
    x = x_ref[...]                                              # [TILE_B, F]
    h1 = jnp.tanh(
        jnp.dot(x, w1_ref[...], preferred_element_type=jnp.float32)
        + b1_ref[...])                                          # [TILE_B, H1]
    h2 = jnp.tanh(
        jnp.dot(h1, w2_ref[...], preferred_element_type=jnp.float32)
        + b2_ref[...])                                          # [TILE_B, H2]
    # Output layer (out_features == 1): contract [1, H2] against [TILE_B, H2]
    # on the MXU -> lane-dense [1, TILE_B] row (unmasked full-lane stores),
    # instead of a [TILE_B, 1] column that would need masked vst.msk stores.
    y = lax.dot_general(
        w3_ref[...], h2,
        dimension_numbers=(((1,), (1,)), ((), ())),
        preferred_element_type=jnp.float32)                     # [1, TILE_B]
    o_ref[...] = (y + b3_ref[0]).astype(o_ref.dtype)


def annr_forward(x, w1, b1, w2, b2, w3, b3, *, tile_b=4096):
    """x: [B, F]; w1: [F, H1]; b1: [1, H1]; w2: [H1, H2]; b2: [1, H2];
    w3: [H2, 1]; b3: [1, 1].  Returns [B, 1] float32."""
    B, F = x.shape
    H1 = w1.shape[1]
    H2 = w2.shape[1]

    w3_row = w3.reshape(1, H2)   # row vector for the output-layer contraction
    b3_s = b3.reshape(-1)        # scalar, lives in SMEM

    vmem_ceiling = _vmem_ceiling_bytes()
    tile_b = _choose_tile_b(B, F, tile_b, vmem_ceiling)

    # Pad B up to a tile multiple (padded rows computed then sliced off).
    B_pad = _round_up(B, tile_b)
    if B_pad != B:
        x = jnp.pad(x, ((0, B_pad - B), (0, 0)))
    num_tiles = B_pad // tile_b
    grid = (num_tiles,)

    # Deeper buffering on the streaming x input once tiles are MiB-scale and
    # there are several of them (hides residual DMA latency).
    x_tile_bytes = 4 * tile_b * F
    use_deep_buffer = (num_tiles > 2) and (x_tile_bytes >= (1 << 20))
    if use_deep_buffer:
        x_spec = pl.BlockSpec((tile_b, F), lambda i: (i, 0),
                              pipeline_mode=pl.Buffered(3))
        n_x_bufs = 3
    else:
        x_spec = pl.BlockSpec((tile_b, F), lambda i: (i, 0))
        n_x_bufs = 2

    # VMEM budget: resident params (conservatively 2x in case constant-index
    # inputs are still double-buffered) + streaming x / out buffers + margin.
    param_bytes = 4 * (F * H1 + H1 + H1 * H2 + H2 + H2)
    stream_bytes = n_x_bufs * x_tile_bytes + 2 * 4 * tile_b
    want = 2 * param_bytes + stream_bytes + (4 << 20)
    vmem_limit = int(min(vmem_ceiling, max(16 * 1024 * 1024, want)))

    cost = pl.CostEstimate(
        flops=2 * B_pad * (F * H1 + H1 * H2 + H2),
        transcendentals=B_pad * (H1 + H2),
        bytes_accessed=4 * (B_pad * F + B_pad
                            + F * H1 + H1 + H1 * H2 + H2 + H2 + 1),
    )

    out = pl.pallas_call(
        annr_kernel,
        out_shape=jax.ShapeDtypeStruct((1, B_pad), jnp.float32),
        grid=grid,
        in_specs=[
            x_spec,                                              # x: streamed
            pl.BlockSpec((F, H1), lambda i: (0, 0)),             # w1: resident
            pl.BlockSpec((1, H1), lambda i: (0, 0)),             # b1: resident
            pl.BlockSpec((H1, H2), lambda i: (0, 0)),            # w2: resident
            pl.BlockSpec((1, H2), lambda i: (0, 0)),             # b2: resident
            pl.BlockSpec((1, H2), lambda i: (0, 0)),             # w3 row
            pl.BlockSpec(memory_space=pltpu.MemorySpace.SMEM),   # b3 scalar
        ],
        # Lane-dense output: each grid step writes a full [1, tile_b] row.
        out_specs=pl.BlockSpec((1, tile_b), lambda i: (0, i)),
        compiler_params=pltpu.CompilerParams(
            dimension_semantics=("parallel",),
            vmem_limit_bytes=vmem_limit,
        ),
        cost_estimate=cost,
    )(x, w1, b1, w2, b2, w3_row, b3_s)

    # (1, B_pad) row slab -> [B, 1] column (wrapper-side layout plumbing).
    return out.reshape(B_pad, 1)[:B]


def init_params(feature_size, key):
    """Deterministic parameter init mirroring the PyTorch shapes.

    fc1.weight ~ xavier_normal, fc2.weight ~ xavier_uniform, output.weight /
    all biases ~ small uniform (PyTorch Linear default style).  Weights are
    returned pre-transposed to [in, out] for the kernel."""
    h1 = int(feature_size * 0.75)
    h2 = int(feature_size * 0.75 * 0.75)

    k1, k2, k3, kb1, kb2, kb3 = jax.random.split(key, 6)

    std1 = (2.0 / (feature_size + h1)) ** 0.5           # xavier normal
    w1 = jax.random.normal(k1, (feature_size, h1), jnp.float32) * std1

    lim2 = (6.0 / (h1 + h2)) ** 0.5                     # xavier uniform
    w2 = jax.random.uniform(k2, (h1, h2), jnp.float32, -lim2, lim2)

    lim3 = 1.0 / (h2 ** 0.5)                            # default Linear-style
    w3 = jax.random.uniform(k3, (h2, 1), jnp.float32, -lim3, lim3)

    b1 = jax.random.uniform(kb1, (1, h1), jnp.float32,
                            -1.0 / feature_size ** 0.5, 1.0 / feature_size ** 0.5)
    b2 = jax.random.uniform(kb2, (1, h2), jnp.float32,
                            -1.0 / h1 ** 0.5, 1.0 / h1 ** 0.5)
    b3 = jax.random.uniform(kb3, (1, 1), jnp.float32,
                            -1.0 / h2 ** 0.5, 1.0 / h2 ** 0.5)
    return w1, b1, w2, b2, w3, b3


def annr_reference(x, w1, b1, w2, b2, w3, b3):
    h1 = jnp.tanh(x @ w1 + b1)
    h2 = jnp.tanh(h1 @ w2 + b2)
    return h2 @ w3 + b3


if __name__ == "__main__":
    feature_size = 32
    batch = 8

    key = jax.random.PRNGKey(0)
    kx, kp = jax.random.split(key)
    x = jax.random.normal(kx, (batch, feature_size), jnp.float32)
    params = init_params(feature_size, kp)

    out = annr_forward(x, *params)
    out = jax.block_until_ready(out)

    ref = annr_reference(x, *params)
    assert out.shape == (batch, 1), out.shape
    assert jnp.allclose(out, ref, atol=1e-4, rtol=1e-4), (
        float(jnp.max(jnp.abs(out - ref))))

    print("KERNEL_OK")
</pallas_src>

<mosaic_0001>
module attributes {stable_mosaic.version = 11 : i64} {
  func.func @annr_kernel(%arg0: i32, %arg1: memref<8x32xf32, #tpu.memory_space<vmem>>, %arg2: memref<32x24xf32, #tpu.memory_space<vmem>>, %arg3: memref<1x24xf32, #tpu.memory_space<vmem>>, %arg4: memref<24x18xf32, #tpu.memory_space<vmem>>, %arg5: memref<1x18xf32, #tpu.memory_space<vmem>>, %arg6: memref<1x18xf32, #tpu.memory_space<vmem>>, %arg7: memref<1xf32, #tpu.memory_space<smem>>, %arg8: memref<1x8xf32, #tpu.memory_space<vmem>>) attributes {dimension_semantics = [#tpu.dimension_semantics<parallel>], iteration_bounds = array<i64: 1>, scalar_prefetch = 0 : i64, scratch_operands = 0 : i64, tpu.core_type = #tpu.core_type<tc>, window_params = [{transform_indices = @transform_0, window_bounds = array<i64: 8, 32>}, {pipeline_mode = #tpu.pipeline_mode<synchronous>, transform_indices = @transform_1, window_bounds = array<i64: 32, 24>}, {pipeline_mode = #tpu.pipeline_mode<synchronous>, transform_indices = @transform_2, window_bounds = array<i64: 1, 24>}, {pipeline_mode = #tpu.pipeline_mode<synchronous>, transform_indices = @transform_3, window_bounds = array<i64: 24, 18>}, {pipeline_mode = #tpu.pipeline_mode<synchronous>, transform_indices = @transform_4, window_bounds = array<i64: 1, 18>}, {pipeline_mode = #tpu.pipeline_mode<synchronous>, transform_indices = @transform_5, window_bounds = array<i64: 1, 18>}, {transform_indices = @transform_6, window_bounds = array<i64: 1>}, {transform_indices = @transform_7, window_bounds = array<i64: 1, 8>}]} {
    %c0 = arith.constant 0 : index
    %c0_0 = arith.constant 0 : index
    %0 = vector.load %arg1[%c0, %c0_0] : memref<8x32xf32, #tpu.memory_space<vmem>>, vector<8x32xf32>
    %c0_1 = arith.constant 0 : index
    %c0_2 = arith.constant 0 : index
    %1 = vector.load %arg2[%c0_1, %c0_2] : memref<32x24xf32, #tpu.memory_space<vmem>>, vector<32x24xf32>
    %cst = arith.constant dense<0.000000e+00> : vector<8x24xf32>
    %2 = tpu.matmul %0, %1, %cst {dimension_numbers = #tpu.dot_dimension_numbers<[1], [0], [0], [1], [0, 0, 1, 1], [], []>} : vector<8x32xf32>, vector<32x24xf32>, vector<8x24xf32> -> vector<8x24xf32>
    %c0_3 = arith.constant 0 : index
    %c0_4 = arith.constant 0 : index
    %3 = vector.load %arg3[%c0_3, %c0_4] : memref<1x24xf32, #tpu.memory_space<vmem>>, vector<1x24xf32>
    %4 = vector.broadcast %3 : vector<1x24xf32> to vector<8x24xf32>
    %5 = arith.addf %2, %4 : vector<8x24xf32>
    %6 = math.tanh %5 : vector<8x24xf32>
    %c0_5 = arith.constant 0 : index
    %c0_6 = arith.constant 0 : index
    %7 = vector.load %arg4[%c0_5, %c0_6] : memref<24x18xf32, #tpu.memory_space<vmem>>, vector<24x18xf32>
    %cst_7 = arith.constant dense<0.000000e+00> : vector<8x18xf32>
    %8 = tpu.matmul %6, %7, %cst_7 {dimension_numbers = #tpu.dot_dimension_numbers<[1], [0], [0], [1], [0, 0, 1, 1], [], []>} : vector<8x24xf32>, vector<24x18xf32>, vector<8x18xf32> -> vector<8x18xf32>
    %c0_8 = arith.constant 0 : index
    %c0_9 = arith.constant 0 : index
    %9 = vector.load %arg5[%c0_8, %c0_9] : memref<1x18xf32, #tpu.memory_space<vmem>>, vector<1x18xf32>
    %10 = vector.broadcast %9 : vector<1x18xf32> to vector<8x18xf32>
    %11 = arith.addf %8, %10 : vector<8x18xf32>
    %12 = math.tanh %11 : vector<8x18xf32>
    %c0_10 = arith.constant 0 : index
    %c0_11 = arith.constant 0 : index
    %13 = vector.load %arg6[%c0_10, %c0_11] : memref<1x18xf32, #tpu.memory_space<vmem>>, vector<1x18xf32>
    %cst_12 = arith.constant dense<0.000000e+00> : vector<1x8xf32>
    %14 = tpu.matmul %13, %12, %cst_12 {dimension_numbers = #tpu.dot_dimension_numbers<[1], [1], [0], [0], [0, 0, 1, 0], [], []>} : vector<1x18xf32>, vector<8x18xf32>, vector<1x8xf32> -> vector<1x8xf32>
    %c0_13 = arith.constant 0 : index
    %15 = memref.load %arg7[%c0_13] : memref<1xf32, #tpu.memory_space<smem>>
    %16 = vector.broadcast %15 : f32 to vector<1x8xf32>
    %17 = arith.addf %14, %16 : vector<1x8xf32>
    %c0_14 = arith.constant 0 : index
    %c0_15 = arith.constant 0 : index
    %18 = vector.load %arg8[%c0_14, %c0_15] : memref<1x8xf32, #tpu.memory_space<vmem>>, vector<1x8xf32>
    tpu.vector_store %arg8[%c0_14, %c0_15], %17 {strides = array<i32>} : memref<1x8xf32, #tpu.memory_space<vmem>>, vector<1x8xf32>,
    return
  }
  func.func @transform_0(%arg0: i32) -> (i32, i32) {
    %c0_i32 = arith.constant 0 : i32
    %c0_i32_0 = arith.constant 0 : i32
    return %arg0, %c0_i32 : i32, i32
  }
  func.func @transform_1(%arg0: i32) -> (i32, i32) {
    %c0_i32 = arith.constant 0 : i32
    %c0_i32_0 = arith.constant 0 : i32
    %c0_i32_1 = arith.constant 0 : i32
    return %c0_i32, %c0_i32_0 : i32, i32
  }
  func.func @transform_2(%arg0: i32) -> (i32, i32) {
    %c0_i32 = arith.constant 0 : i32
    %c0_i32_0 = arith.constant 0 : i32
    %c0_i32_1 = arith.constant 0 : i32
    return %c0_i32, %c0_i32_0 : i32, i32
  }
  func.func @transform_3(%arg0: i32) -> (i32, i32) {
    %c0_i32 = arith.constant 0 : i32
    %c0_i32_0 = arith.constant 0 : i32
    %c0_i32_1 = arith.constant 0 : i32
    return %c0_i32, %c0_i32_0 : i32, i32
  }
  func.func @transform_4(%arg0: i32) -> (i32, i32) {
    %c0_i32 = arith.constant 0 : i32
    %c0_i32_0 = arith.constant 0 : i32
    %c0_i32_1 = arith.constant 0 : i32
    return %c0_i32, %c0_i32_0 : i32, i32
  }
  func.func @transform_5(%arg0: i32) -> (i32, i32) {
    %c0_i32 = arith.constant 0 : i32
    %c0_i32_0 = arith.constant 0 : i32
    %c0_i32_1 = arith.constant 0 : i32
    return %c0_i32, %c0_i32_0 : i32, i32
  }
  func.func @transform_6(%arg0: i32) -> i32 {
    %c0_i32 = arith.constant 0 : i32
    %c0_i32_0 = arith.constant 0 : i32
    return %c0_i32 : i32
  }
  func.func @transform_7(%arg0: i32) -> (i32, i32) {
    %c0_i32 = arith.constant 0 : i32
    %c0_i32_0 = arith.constant 0 : i32
    return %c0_i32, %arg0 : i32, i32
  }
}

</mosaic_0001>

<llo_original>
// kernel: tpu_custom_call.1
$region0: #{tpu_custom_call.1}
  #allocation0 [shape = 'u32[]', space=smem, size = 0x4, offset = 0x4, fixed_abs, tag = 'smem constant byte address 0x4 - core index']
  #allocation1 [shape = 'u32[144,128]{1,0:T(1,128)}', space=vmem, size = 0x12000, scoped, tag = 'internal scratch']
  #allocation2 [shape = 'f32[1]{0:T(128)S(6)}', space=smem, size = 0x200, scoped, tag = 'scoped memory for tpu_custom_call.1']
  %s0 = inlined_call_operand.vmem [shape: f32[8,32], index: 0, kind: input, shape index: {}]
  %s1 = inlined_call_operand.vmem [shape: f32[32,24], index: 1, kind: input, shape index: {}]
  %s2 = inlined_call_operand.vmem [shape: f32[1,24], index: 2, kind: input, shape index: {}]
  %s3 = inlined_call_operand.vmem [shape: f32[24,18], index: 3, kind: input, shape index: {}]
  %s4 = inlined_call_operand.vmem [shape: f32[1,18], index: 4, kind: input, shape index: {}]
  %s5 = inlined_call_operand.vmem [shape: f32[1,18], index: 5, kind: input, shape index: {}]
  %s6 = inlined_call_operand.<no memory space> [shape: f32[1], index: 6, kind: input, shape index: {}]
  %s7 = inlined_call_operand.hbm [shape: f32[1,8], index: 7, kind: output, shape index: {}]
  %s8 = sld [smem:[#allocation0]]
  $region38: #{tpu_custom_call.1} parent=0
    _
  %s10 = ssub.s32 1, %s8
  %s11 = scalar_select 0, %s10, %s8
  %12 = sst [smem:[#allocation2]] %s6
  $region1: #{tpu_custom_call.1} parent=0
    #allocation3 [shape = 'u8[512]{0}', space=vmem, size = 0x400, scoped, tag = 'output window, operand 0, single buffered']
    #allocation4 [shape = 's32[1]{0}', space=sflag, size = 0x4, scoped, tag = 'scoped memory for tpu_custom_call.1']
    %13 = vsyncpa [#allocation4], 0
    // Predicated region
    $region2: #{tpu_custom_call.1} parent=1 // pred_check
      _
    $region3: #{tpu_custom_call.1} parent=1 // pred_check_branch
      %15 = sbr.rel (0) target = $region5
    $region4: #{tpu_custom_call.1} parent=1 // pred_region
      _
    $region5: #{tpu_custom_call.1} parent=1 // pred_fallthru
      _
    // Predicated region
    $region6: #{tpu_custom_call.1} parent=1 // pred_check
      _
    $region7: #{tpu_custom_call.1} parent=1 // pred_check_branch
      %17 = sbr.rel (0) target = $region9
    $region8: #{tpu_custom_call.1} parent=1 // pred_region
      _
    $region9: #{tpu_custom_call.1} parent=1 // pred_fallthru
      _
    // Predicated region
    $region10: #{tpu_custom_call.1} parent=1 // pred_check
      _
    $region11: #{tpu_custom_call.1} parent=1 // pred_check_branch
      %19 = sbr.rel (0) target = $region13
    $region12: #{tpu_custom_call.1} parent=1 // pred_region
      _
    $region13: #{tpu_custom_call.1} parent=1 // pred_fallthru
      _
    // Predicated region
    $region14: #{tpu_custom_call.1} parent=1 // pred_check
      _
    $region15: #{tpu_custom_call.1} parent=1 // pred_check_branch
      %21 = sbr.rel (0) target = $region17
    $region16: #{tpu_custom_call.1} parent=1 // pred_region
      _
    $region17: #{tpu_custom_call.1} parent=1 // pred_fallthru
      _
    // Predicated region
    $region18: #{tpu_custom_call.1} parent=1 // pred_check
      _
    $region19: #{tpu_custom_call.1} parent=1 // pred_check_branch
      %23 = sbr.rel (0) target = $region21
    $region20: #{tpu_custom_call.1} parent=1 // pred_region
      _
    $region21: #{tpu_custom_call.1} parent=1 // pred_fallthru
      _
    // Predicated region
    $region22: #{tpu_custom_call.1} parent=1 // pred_check
      _
    $region23: #{tpu_custom_call.1} parent=1 // pred_check_branch
      %25 = sbr.rel (0) target = $region25
    $region24: #{tpu_custom_call.1} parent=1 // pred_region
      _
    $region25: #{tpu_custom_call.1} parent=1 // pred_fallthru
      _
    // Predicated region
    $region26: #{tpu_custom_call.1} parent=1 // pred_check
      _
    $region27: #{tpu_custom_call.1} parent=1 // pred_check_branch
      %27 = sbr.rel (0) target = $region29
    $region28: #{tpu_custom_call.1} parent=1 // pred_region
      _
    $region29: #{tpu_custom_call.1} parent=1 // pred_fallthru
      _
    %v28 = vld [vmem:[%s0] sm:$0xff]
    %v29 = vld [vmem:[%s1] sm:$0xff]
    %v30 = vld [vmem:[%s1 + $0x8] sm:$0xff]
    %v31 = vld [vmem:[%s1 + $0x10] sm:$0xff]
    %v32 = vld [vmem:[%s1 + $0x18] sm:$0xff]
    %v33 = vld [vmem:[%s2] sm:$0x1]
    %v35 = vlaneseq
    %v36 = vshrl.u32 %v35, 7
    %v37 = vsub.s32 0, %v36
    %v38 = vrot.slane %v33, %v37
    %vm40 = vcmask 261120
    %v42 = vsel %vm40, %v28, 0
    %44 = vmatprep.subr.mxu0 0.0
    %45 = vmatpush1.msra.mxu0 0.0
    %46 = vmatprep.subr.mxu0 0.0
    %47 = vmatpush1.msra.mxu0 0.0
    %48 = vmatprep.subr.mxu0 0.0
    %49 = vmatpush1.msra.mxu0 0.0
    %50 = vmatprep.subr.mxu0 0.0
    %51 = vmatpush1.msra.mxu0 0.0
    %52 = vmatprep.subr.mxu0 0.0
    %53 = vmatpush1.msra.mxu0 0.0
    %54 = vmatprep.subr.mxu0 0.0
    %55 = vmatpush1.msra.mxu0 0.0
    %56 = vmatprep.subr.mxu0 0.0
    %57 = vmatpush1.msra.mxu0 0.0
    %58 = vmatprep.subr.mxu0 0.0
    %59 = vmatpush1.msra.mxu0 0.0
    %60 = vmatprep.subr.mxu0 0.0
    %61 = vmatpush1.msra.mxu0 0.0
    %62 = vmatprep.subr.mxu0 0.0
    %63 = vmatpush1.msra.mxu0 0.0
    %64 = vmatprep.subr.mxu0 0.0
    %65 = vmatpush1.msra.mxu0 0.0
    %66 = vmatprep.subr.mxu0 0.0
    %67 = vmatpush1.msra.mxu0 0.0
    %68 = vmatprep.subr.mxu0 0.0
    %69 = vmatpush1.msra.mxu0 %v32
    %70 = vmatprep.subr.mxu0 0.0
    %71 = vmatpush1.msra.mxu0 %v31
    %72 = vmatprep.subr.mxu0 0.0
    %73 = vmatpush1.msra.mxu0 %v30
    %74 = vmatprep.subr.mxu0 0.0
    %75 = vmatpush1.msra.mxu0 %v29
    %76 = vmatprep.subr.mxu0 0.0
    %77 = vmatpush2.msra.mxu0 0.0
    %78 = vmatprep.subr.mxu0 0.0
    %79 = vmatpush2.msra.mxu0 0.0
    %80 = vmatprep.subr.mxu0 0.0
    %81 = vmatpush2.msra.mxu0 0.0
    %82 = vmatprep.subr.mxu0 0.0
    %83 = vmatpush2.msra.mxu0 0.0
    %84 = vmatprep.subr.mxu0 0.0
    %85 = vmatpush2.msra.mxu0 0.0
    %86 = vmatprep.subr.mxu0 0.0
    %87 = vmatpush2.msra.mxu0 0.0
    %88 = vmatprep.subr.mxu0 0.0
    %89 = vmatpush2.msra.mxu0 0.0
    %90 = vmatprep.subr.mxu0 0.0
    %91 = vmatpush2.msra.mxu0 0.0
    %92 = vmatprep.subr.mxu0 0.0
    %93 = vmatpush2.msra.mxu0 0.0
    %94 = vmatprep.subr.mxu0 0.0
    %95 = vmatpush2.msra.mxu0 0.0
    %96 = vmatprep.subr.mxu0 0.0
    %97 = vmatpush2.msra.mxu0 0.0
    %98 = vmatprep.subr.mxu0 0.0
    %99 = vmatpush2.msra.mxu0 0.0
    %100 = vmatprep.subr.mxu0 0.0
    %101 = vmatpush2.msra.mxu0 0.0
    %102 = vmatprep.subr.mxu0 0.0
    %103 = vmatpush2.msra.mxu0 0.0
    %104 = vmatprep.subr.mxu0 0.0
    %105 = vmatpush2.msra.mxu0 0.0
    %106 = vmatprep.subr.mxu0 0.0
    %107 = vmatpush2.msra.mxu0 0.0
    %108 = vmatprep.mubr.f32.mxu0 0.0
    %109 = vmatmul.mubr.f32.gmra.mxu0 %v42
    %v110 = vpop.f32.mrf.mxu0
    %v111 = vadd.f32 %v38, %v110
    %v112 = vpop.f32.mrf.mxu0
    %113 = vdwg.mxu0
    %v114 = vtanh.pop %v111
    %v115 = vld [vmem:[%s3] sm:$0xff]
    %v116 = vld [vmem:[%s3 + $0x8] sm:$0xff]
    %v117 = vld [vmem:[%s3 + $0x10] sm:$0xff]
    %v118 = vld [vmem:[%s4] sm:$0x1]
    %v120 = vlaneseq
    %v121 = vshrl.u32 %v120, 7
    %v122 = vsub.s32 0, %v121
    %v123 = vrot.slane %v118, %v122
    %vm125 = vcmask 195584
    %v127 = vsel %vm125, %v114, 0
    %129 = vmatprep.subr.mxu0 0.0
    %130 = vmatpush1.msra.mxu0 0.0
    %131 = vmatprep.subr.mxu0 0.0
    %132 = vmatpush1.msra.mxu0 0.0
    %133 = vmatprep.subr.mxu0 0.0
    %134 = vmatpush1.msra.mxu0 0.0
    %135 = vmatprep.subr.mxu0 0.0
    %136 = vmatpush1.msra.mxu0 0.0
    %137 = vmatprep.subr.mxu0 0.0
    %138 = vmatpush1.msra.mxu0 0.0
    %139 = vmatprep.subr.mxu0 0.0
    %140 = vmatpush1.msra.mxu0 0.0
    %141 = vmatprep.subr.mxu0 0.0
    %142 = vmatpush1.msra.mxu0 0.0
    %143 = vmatprep.subr.mxu0 0.0
    %144 = vmatpush1.msra.mxu0 0.0
    %145 = vmatprep.subr.mxu0 0.0
    %146 = vmatpush1.msra.mxu0 0.0
    %147 = vmatprep.subr.mxu0 0.0
    %148 = vmatpush1.msra.mxu0 0.0
    %149 = vmatprep.subr.mxu0 0.0
    %150 = vmatpush1.msra.mxu0 0.0
    %151 = vmatprep.subr.mxu0 0.0
    %152 = vmatpush1.msra.mxu0 0.0
    %153 = vmatprep.subr.mxu0 0.0
    %154 = vmatpush1.msra.mxu0 0.0
    %155 = vmatprep.subr.mxu0 0.0
    %156 = vmatpush1.msra.mxu0 %v117
    %157 = vmatprep.subr.mxu0 0.0
    %158 = vmatpush1.msra.mxu0 %v116
    %159 = vmatprep.subr.mxu0 0.0
    %160 = vmatpush1.msra.mxu0 %v115
    %161 = vmatprep.subr.mxu0 0.0
    %162 = vmatpush2.msra.mxu0 0.0
    %163 = vmatprep.subr.mxu0 0.0
    %164 = vmatpush2.msra.mxu0 0.0
    %165 = vmatprep.subr.mxu0 0.0
    %166 = vmatpush2.msra.mxu0 0.0
    %167 = vmatprep.subr.mxu0 0.0
    %168 = vmatpush2.msra.mxu0 0.0
    %169 = vmatprep.subr.mxu0 0.0
    %170 = vmatpush2.msra.mxu0 0.0
    %171 = vmatprep.subr.mxu0 0.0
    %172 = vmatpush2.msra.mxu0 0.0
    %173 = vmatprep.subr.mxu0 0.0
    %174 = vmatpush2.msra.mxu0 0.0
    %175 = vmatprep.subr.mxu0 0.0
    %176 = vmatpush2.msra.mxu0 0.0
    %177 = vmatprep.subr.mxu0 0.0
    %178 = vmatpush2.msra.mxu0 0.0
    %179 = vmatprep.subr.mxu0 0.0
    %180 = vmatpush2.msra.mxu0 0.0
    %181 = vmatprep.subr.mxu0 0.0
    %182 = vmatpush2.msra.mxu0 0.0
    %183 = vmatprep.subr.mxu0 0.0
    %184 = vmatpush2.msra.mxu0 0.0
    %185 = vmatprep.subr.mxu0 0.0
    %186 = vmatpush2.msra.mxu0 0.0
    %187 = vmatprep.subr.mxu0 0.0
    %188 = vmatpush2.msra.mxu0 0.0
    %189 = vmatprep.subr.mxu0 0.0
    %190 = vmatpush2.msra.mxu0 0.0
    %191 = vmatprep.subr.mxu0 0.0
    %192 = vmatpush2.msra.mxu0 0.0
    %193 = vmatprep.mubr.f32.mxu0 0.0
    %194 = vmatmul.mubr.f32.gmra.mxu0 %v127
    %v195 = vpop.f32.mrf.mxu0
    %v196 = vadd.f32 %v123, %v195
    %v197 = vpop.f32.mrf.mxu0
    %198 = vdwg.mxu0
    %v199 = vtanh.pop %v196
    %v200 = vld [vmem:[%s5] sm:$0x1]
    %s201 = sld [smem:[#allocation2]]
    %v202 = vstv %s201
    %vm203 = vcmask 146432
    %v205 = vsel %vm203, %v200, 0
    %v208 = vsel %vm203, %v199, 0
    %210 = vmatprep.subr.mxu0 0.0
    %211 = vmatpush1.xpose.msra.mxu0 0.0
    %212 = vmatprep.subr.mxu0 0.0
    %213 = vmatpush1.xpose.msra.mxu0 0.0
    %214 = vmatprep.subr.mxu0 0.0
    %215 = vmatpush1.xpose.msra.mxu0 0.0
    %216 = vmatprep.subr.mxu0 0.0
    %217 = vmatpush1.xpose.msra.mxu0 0.0
    %218 = vmatprep.subr.mxu0 0.0
    %219 = vmatpush1.xpose.msra.mxu0 0.0
    %220 = vmatprep.subr.mxu0 0.0
    %221 = vmatpush1.xpose.msra.mxu0 0.0
    %222 = vmatprep.subr.mxu0 0.0
    %223 = vmatpush1.xpose.msra.mxu0 0.0
    %224 = vmatprep.subr.mxu0 0.0
    %225 = vmatpush1.xpose.msra.mxu0 0.0
    %226 = vmatprep.subr.mxu0 0.0
    %227 = vmatpush1.xpose.msra.mxu0 0.0
    %228 = vmatprep.subr.mxu0 0.0
    %229 = vmatpush1.xpose.msra.mxu0 0.0
    %230 = vmatprep.subr.mxu0 0.0
    %231 = vmatpush1.xpose.msra.mxu0 0.0
    %232 = vmatprep.subr.mxu0 0.0
    %233 = vmatpush1.xpose.msra.mxu0 0.0
    %234 = vmatprep.subr.mxu0 0.0
    %235 = vmatpush1.xpose.msra.mxu0 0.0
    %236 = vmatprep.subr.mxu0 0.0
    %237 = vmatpush1.xpose.msra.mxu0 0.0
    %238 = vmatprep.subr.mxu0 0.0
    %239 = vmatpush1.xpose.msra.mxu0 0.0
    %240 = vmatprep.subr.mxu0 0.0
    %241 = vmatpush1.xpose.msra.mxu0 %v208
    %242 = vmatprep.subr.mxu0 0.0
    %243 = vmatpush2.xpose.msra.mxu0 0.0
    %244 = vmatprep.subr.mxu0 0.0
    %245 = vmatpush2.xpose.msra.mxu0 0.0
    %246 = vmatprep.subr.mxu0 0.0
    %247 = vmatpush2.xpose.msra.mxu0 0.0
    %248 = vmatprep.subr.mxu0 0.0
    %249 = vmatpush2.xpose.msra.mxu0 0.0
    %250 = vmatprep.subr.mxu0 0.0
    %251 = vmatpush2.xpose.msra.mxu0 0.0
    %252 = vmatprep.subr.mxu0 0.0
    %253 = vmatpush2.xpose.msra.mxu0 0.0
    %254 = vmatprep.subr.mxu0 0.0
    %255 = vmatpush2.xpose.msra.mxu0 0.0
    %256 = vmatprep.subr.mxu0 0.0
    %257 = vmatpush2.xpose.msra.mxu0 0.0
    %258 = vmatprep.subr.mxu0 0.0
    %259 = vmatpush2.xpose.msra.mxu0 0.0
    %260 = vmatprep.subr.mxu0 0.0
    %261 = vmatpush2.xpose.msra.mxu0 0.0
    %262 = vmatprep.subr.mxu0 0.0
    %263 = vmatpush2.xpose.msra.mxu0 0.0
    %264 = vmatprep.subr.mxu0 0.0
    %265 = vmatpush2.xpose.msra.mxu0 0.0
    %266 = vmatprep.subr.mxu0 0.0
    %267 = vmatpush2.xpose.msra.mxu0 0.0
    %268 = vmatprep.subr.mxu0 0.0
    %269 = vmatpush2.xpose.msra.mxu0 0.0
    %270 = vmatprep.subr.mxu0 0.0
    %271 = vmatpush2.xpose.msra.mxu0 0.0
    %272 = vmatprep.subr.mxu0 0.0
    %273 = vmatpush2.xpose.msra.mxu0 0.0
    %274 = vmatprep.mubr.f32.mxu0 0.0
    %275 = vmatmul.mubr.f32.gmra.mxu0 %v205
    %v276 = vpop.f32.mrf.mxu0
    %v277 = vadd.f32 %v202, %v276
    %v278 = vpop.f32.mrf.mxu0
    %279 = vdwg.mxu0
    %vm280 = vcmask 57344
    %281 = vst.msk [vmem:[#allocation3] sm:$0x1] %vm280, %v277
    // Predicated region
    $region30: #{tpu_custom_call.1} parent=1 // pred_check
      _
    $region31: #{tpu_custom_call.1} parent=1 // pred_check_branch
      %283 = sbr.rel (0) target = $region33
    $region32: #{tpu_custom_call.1} parent=1 // pred_region
      %s285 = ssub.s32 16, 16
      %286 = vsyncadd [#allocation4], %s285
      %s288 = sshll.u32 [#allocation3], 4
      %s289 = int_to_ptr.vmem [resolvable:$true] %s288
      %291 = dma.vmem_to_hbm [thread:$0]  %s289, 16, %s7, [#allocation4]
    $region33: #{tpu_custom_call.1} parent=1 // pred_fallthru
      _
    // Predicated region
    $region34: #{tpu_custom_call.1} parent=1 // pred_check
      _
    $region35: #{tpu_custom_call.1} parent=1 // pred_check_branch
      %293 = sbr.rel (0) target = $region37
    $region36: #{tpu_custom_call.1} parent=1 // pred_region
      %294 = dma.done [#allocation4], 16
    $region37: #{tpu_custom_call.1} parent=1 // pred_fallthru
      _
    %295 = vsyncpa [#allocation4], 1

</llo_original>
